<compile_context>
chip_gen: v7x
topology: tpu7x:2x2x1
jax: 0.10.0
libtpu: 0.0.40
codegen_flags: <defaults>
</compile_context>

<pallas_src>
import jax
import jax.numpy as jnp
from jax.experimental import pallas as pl
from jax.experimental.pallas import tpu as pltpu

SUBLANE = 8


def _round_up(x, m):
    return ((x + m - 1) // m) * m


def _linear_kernel(x_ref, w_ref, b_ref, o_ref):
    # (tb, IN) @ (IN, OUT) on the MXU, f32 accumulate, bias broadcast-add.
    acc = jnp.dot(x_ref[...], w_ref[...], preferred_element_type=jnp.float32)
    o_ref[...] = (acc + b_ref[...]).astype(o_ref.dtype)


def prepare_params(weight, bias):
    """One-time parameter prep (do NOT call per forward).

    weight: (OUT, IN) float32  -- PyTorch nn.Linear layout
    bias:   (OUT,)    float32
    returns w_t (IN, OUT), b_row (1, OUT).  No padding: last dims are used as
    full-extent blocks inside the kernel (exempt from the 128-lane rule).
    """
    w_t = jnp.asarray(weight).T               # (IN, OUT)
    b_row = jnp.asarray(bias).reshape(1, -1)  # (1, OUT)
    return w_t, b_row


def dummy_model_forward(x, w_t, b_row, *, max_tb=4096, use_pallas=None):
    """y = x @ W^T + b (nn.Linear semantics) with pre-prepped params.

    x:     (B, IN)   float32
    w_t:   (IN, OUT) float32   (from prepare_params)
    b_row: (1, OUT)  float32   (from prepare_params)
    returns (B, OUT) float32
    """
    B, in_f = x.shape
    in_w, out_f = w_t.shape
    assert in_f == in_w, "feature dim mismatch between x and prepared weight"

    if B == 0:
        return jnp.zeros((0, out_f), x.dtype)

    if use_pallas is None:
        # Tiny problems: fixed pallas_call overhead dwarfs the work and the
        # custom call blocks XLA fusion -- use plain JAX.
        use_pallas = B * max(in_f, out_f) >= 64 * 1024
    if not use_pallas:
        return x @ w_t + b_row[0]

    # Batch tile: multiple of 8 sublanes, capped by max_tb.  Sizing from
    # cdiv(B, 2) guarantees >= 2 grid steps whenever B > 8, so the "parallel"
    # batch axis can actually be sharded across v7x's two TensorCores.
    tb = min(max_tb, _round_up(pl.cdiv(B, 2), SUBLANE))
    grid = (pl.cdiv(B, tb),)  # partial last block is masked by Pallas

    flops = 2 * B * in_f * out_f
    bytes_accessed = 4 * (B * in_f + in_f * out_f + out_f + B * out_f)

    return pl.pallas_call(
        _linear_kernel,
        out_shape=jax.ShapeDtypeStruct((B, out_f), x.dtype),
        grid=grid,
        in_specs=[
            # x: tiled over batch; last dim = full array extent (exempt).
            pl.BlockSpec((tb, in_f), lambda i: (i, 0)),
            # weight/bias: constant index_map -> stay resident in VMEM.
            pl.BlockSpec((in_f, out_f), lambda i: (0, 0)),
            pl.BlockSpec((1, out_f), lambda i: (0, 0)),
        ],
        # Exact-width output block: no lane padding to write back, no slice.
        out_specs=pl.BlockSpec((tb, out_f), lambda i: (i, 0)),
        compiler_params=pltpu.CompilerParams(
            dimension_semantics=("parallel",),  # 2-TC sharding on v7x
        ),
        cost_estimate=pl.CostEstimate(
            flops=flops, transcendentals=0, bytes_accessed=bytes_accessed),
    )(x, w_t, b_row)


if __name__ == "__main__":
    key = jax.random.PRNGKey(0)
    k_x1, k_x2, k_w, k_b = jax.random.split(key, 4)

    IN_FEATURES = 10   # fixed by the module: nn.Linear(10, output_size)
    OUT_FEATURES = 4   # output_size

    # Deterministic "PyTorch-like" init: U(-1/sqrt(fan_in), 1/sqrt(fan_in)).
    bound = 1.0 / (IN_FEATURES ** 0.5)
    weight = jax.random.uniform(
        k_w, (OUT_FEATURES, IN_FEATURES), jnp.float32, -bound, bound)
    bias = jax.random.uniform(
        k_b, (OUT_FEATURES,), jnp.float32, -bound, bound)

    # One-time param prep (transpose / reshape happen here, not per call).
    w_t, b_row = prepare_params(weight, bias)
    w_t, b_row = jax.block_until_ready((w_t, b_row))

    # (1) Pallas path: batch that is not a tile multiple, forcing a partial
    #     last block and a >=2-step (megacore-shardable) grid.
    B1 = 333
    x1 = jax.random.normal(k_x1, (B1, IN_FEATURES), jnp.float32)
    y1 = dummy_model_forward(x1, w_t, b_row, use_pallas=True)
    y1 = jax.block_until_ready(y1)
    y1_ref = x1 @ weight.T + bias
    assert y1.shape == (B1, OUT_FEATURES)
    assert jnp.allclose(y1, y1_ref, atol=2e-5, rtol=2e-5)

    # (2) Auto path: tiny demo batch takes the pure-JAX fast path.
    B2 = 8
    x2 = jax.random.normal(k_x2, (B2, IN_FEATURES), jnp.float32)
    y2 = jax.block_until_ready(dummy_model_forward(x2, w_t, b_row))
    assert y2.shape == (B2, OUT_FEATURES)
    assert jnp.allclose(y2, x2 @ weight.T + bias, atol=2e-5, rtol=2e-5)

    print("KERNEL_OK")
</pallas_src>

<mosaic_0001>
module attributes {stable_mosaic.version = 11 : i64} {
  func.func @_linear_kernel(%arg0: i32, %arg1: memref<168x10xf32, #tpu.memory_space<vmem>>, %arg2: memref<10x4xf32, #tpu.memory_space<vmem>>, %arg3: memref<1x4xf32, #tpu.memory_space<vmem>>, %arg4: memref<168x4xf32, #tpu.memory_space<vmem>>) attributes {dimension_semantics = [#tpu.dimension_semantics<parallel>], iteration_bounds = array<i64: 2>, scalar_prefetch = 0 : i64, scratch_operands = 0 : i64, tpu.core_type = #tpu.core_type<tc>, window_params = [{transform_indices = @transform_0, window_bounds = array<i64: 168, 10>}, {pipeline_mode = #tpu.pipeline_mode<synchronous>, transform_indices = @transform_1, window_bounds = array<i64: 10, 4>}, {pipeline_mode = #tpu.pipeline_mode<synchronous>, transform_indices = @transform_2, window_bounds = array<i64: 1, 4>}, {transform_indices = @transform_3, window_bounds = array<i64: 168, 4>}]} {
    %c0 = arith.constant 0 : index
    %c0_0 = arith.constant 0 : index
    %0 = vector.load %arg1[%c0, %c0_0] : memref<168x10xf32, #tpu.memory_space<vmem>>, vector<168x10xf32>
    %c0_1 = arith.constant 0 : index
    %c0_2 = arith.constant 0 : index
    %1 = vector.load %arg2[%c0_1, %c0_2] : memref<10x4xf32, #tpu.memory_space<vmem>>, vector<10x4xf32>
    %cst = arith.constant dense<0.000000e+00> : vector<168x4xf32>
    %2 = tpu.matmul %0, %1, %cst {dimension_numbers = #tpu.dot_dimension_numbers<[1], [0], [0], [1], [0, 0, 1, 1], [], []>} : vector<168x10xf32>, vector<10x4xf32>, vector<168x4xf32> -> vector<168x4xf32>
    %c0_3 = arith.constant 0 : index
    %c0_4 = arith.constant 0 : index
    %3 = vector.load %arg3[%c0_3, %c0_4] : memref<1x4xf32, #tpu.memory_space<vmem>>, vector<1x4xf32>
    %4 = vector.broadcast %3 : vector<1x4xf32> to vector<168x4xf32>
    %5 = arith.addf %2, %4 : vector<168x4xf32>
    %c0_5 = arith.constant 0 : index
    %c0_6 = arith.constant 0 : index
    %6 = vector.load %arg4[%c0_5, %c0_6] : memref<168x4xf32, #tpu.memory_space<vmem>>, vector<168x4xf32>
    tpu.vector_store %arg4[%c0_5, %c0_6], %5 {strides = array<i32>} : memref<168x4xf32, #tpu.memory_space<vmem>>, vector<168x4xf32>,
    return
  }
  func.func @transform_0(%arg0: i32) -> (i32, i32) {
    %c0_i32 = arith.constant 0 : i32
    %c0_i32_0 = arith.constant 0 : i32
    return %arg0, %c0_i32 : i32, i32
  }
  func.func @transform_1(%arg0: i32) -> (i32, i32) {
    %c0_i32 = arith.constant 0 : i32
    %c0_i32_0 = arith.constant 0 : i32
    %c0_i32_1 = arith.constant 0 : i32
    return %c0_i32, %c0_i32_0 : i32, i32
  }
  func.func @transform_2(%arg0: i32) -> (i32, i32) {
    %c0_i32 = arith.constant 0 : i32
    %c0_i32_0 = arith.constant 0 : i32
    %c0_i32_1 = arith.constant 0 : i32
    return %c0_i32, %c0_i32_0 : i32, i32
  }
  func.func @transform_3(%arg0: i32) -> (i32, i32) {
    %c0_i32 = arith.constant 0 : i32
    %c0_i32_0 = arith.constant 0 : i32
    return %arg0, %c0_i32 : i32, i32
  }
}

</mosaic_0001>

<llo_original>
// kernel: tpu_custom_call.1
$region0: #{tpu_custom_call.1}
  #allocation0 [shape = 'u32[]', space=smem, size = 0x4, offset = 0x4, fixed_abs, tag = 'smem constant byte address 0x4 - core index']
  #allocation1 [shape = 'u32[144,128]{1,0:T(1,128)}', space=vmem, size = 0x12000, scoped, tag = 'internal scratch']
  %s0 = inlined_call_operand.vmem [shape: f32[333,10], index: 0, kind: input, shape index: {}]
  %s1 = inlined_call_operand.vmem [shape: f32[10,4], index: 1, kind: input, shape index: {}]
  %s2 = inlined_call_operand.vmem [shape: f32[1,4], index: 2, kind: input, shape index: {}]
  %s3 = inlined_call_operand.vmem [shape: f32[333,4], index: 3, kind: output, shape index: {}]
  %s4 = sld [smem:[#allocation0]]
  $region45: #{tpu_custom_call.1} parent=0
    _
  %s6 = ssub.s32 1, %s4
  %s7 = scalar_select 0, %s6, %s4
  loop: start=0, step=1, limit=4
  $region2: #{tpu_custom_call.1} parent=0 // loop_pre_header
    _
  $region3: #{tpu_custom_call.1} parent=0 // loop_header
    %s9 = sphi 0, %s13
    %p10 = scmp.ge.s32.totalorder %s9, 4
    %s19 = sphi 0, %s21
    %s22 = sphi 0, %s19
    %s23 = sphi 0, %s22
    %s39 = sphi 0, %s23
    %s43 = sphi 0, %s43
    %s45 = sphi 0, %s43
    %s46 = sphi 0, %s45
    %s60 = sphi 0, %s46
    %s64 = sphi 0, %s64
    %s66 = sphi 0, %s64
    %s67 = sphi 0, %s66
    %s81 = sphi 0, %s67
    %s87 = sphi 0, %s89
    %s90 = sphi 0, %s87
    %s91 = sphi 0, %s90
    %s107 = sphi 0, %s91
  $region4: #{tpu_custom_call.1} parent=0 // loop_header_branch
    %12 = sbr.rel (%p10) target = $region8
  $region5: #{tpu_custom_call.1} parent=0 // loop_body
    %s14 = ssub.s32 %s9, 1
    %s15 = ssub.s32 %s9, 2
    %s16 = sadd.s32 %s9, 1
    %s17 = ssub.s32 %s9, %s16
    %p18 = scmp.eq.s32.totalorder %s17, 0
    %s20 = sadd.s32 %s19, 1
    %s21 = scalar_select %p18, %s19, %s20
    %p24 = pneg %p18
    %p25 = scmp.eq.s32.totalorder %s9, 1
    %p26 = por %p24, %p25
    %p27 = scmp.ne.s32.totalorder %s19, %s22
    %p28 = scmp.eq.s32.totalorder %s9, 0
    %p29 = por %p27, %p28
    %p30 = scmp.ne.s32.totalorder %s19, %s22
    %p31 = scmp.eq.s32.totalorder %s14, 1
    %p32 = por %p30, %p31
    %p33 = scmp.ne.s32.totalorder %s22, %s23
    %p34 = scmp.eq.s32.totalorder %s14, 0
    %p35 = por %p33, %p34
    %p36 = scmp.ne.s32.totalorder %s22, %s23
    %p37 = scmp.eq.s32.totalorder %s15, 1
    %p38 = por %p36, %p37
    %p40 = scmp.ne.s32.totalorder %s23, %s39
    %p41 = scmp.eq.s32.totalorder %s15, 0
    %p42 = por %p40, %p41
    %s44 = sadd.s32 %s43, 1
    %p47 = scmp.eq.s32.totalorder %s9, 1
    %p48 = scmp.ne.s32.totalorder %s43, %s45
    %p49 = scmp.eq.s32.totalorder %s9, 0
    %p50 = por %p48, %p49
    %p51 = scmp.ne.s32.totalorder %s43, %s45
    %p52 = scmp.eq.s32.totalorder %s14, 1
    %p53 = por %p51, %p52
    %p54 = scmp.ne.s32.totalorder %s45, %s46
    %p55 = scmp.eq.s32.totalorder %s14, 0
    %p56 = por %p54, %p55
    %p57 = scmp.ne.s32.totalorder %s45, %s46
    %p58 = scmp.eq.s32.totalorder %s15, 1
    %p59 = por %p57, %p58
    %p61 = scmp.ne.s32.totalorder %s46, %s60
    %p62 = scmp.eq.s32.totalorder %s15, 0
    %p63 = por %p61, %p62
    %s65 = sadd.s32 %s64, 1
    %p68 = scmp.eq.s32.totalorder %s9, 1
    %p69 = scmp.ne.s32.totalorder %s64, %s66
    %p70 = scmp.eq.s32.totalorder %s9, 0
    %p71 = por %p69, %p70
    %p72 = scmp.ne.s32.totalorder %s64, %s66
    %p73 = scmp.eq.s32.totalorder %s14, 1
    %p74 = por %p72, %p73
    %p75 = scmp.ne.s32.totalorder %s66, %s67
    %p76 = scmp.eq.s32.totalorder %s14, 0
    %p77 = por %p75, %p76
    %p78 = scmp.ne.s32.totalorder %s66, %s67
    %p79 = scmp.eq.s32.totalorder %s15, 1
    %p80 = por %p78, %p79
    %p82 = scmp.ne.s32.totalorder %s67, %s81
    %p83 = scmp.eq.s32.totalorder %s15, 0
    %p84 = por %p82, %p83
    %s85 = ssub.s32 %s9, %s16
    %p86 = scmp.eq.s32.totalorder %s85, 0
    %s88 = sadd.s32 %s87, 1
    %s89 = scalar_select %p86, %s87, %s88
    %p92 = pneg %p86
    %p93 = scmp.eq.s32.totalorder %s9, 1
    %p94 = por %p92, %p93
    %p95 = scmp.ne.s32.totalorder %s87, %s90
    %p96 = scmp.eq.s32.totalorder %s9, 0
    %p97 = por %p95, %p96
    %p98 = scmp.ne.s32.totalorder %s87, %s90
    %p99 = scmp.eq.s32.totalorder %s14, 1
    %p100 = por %p98, %p99
    %p101 = scmp.ne.s32.totalorder %s90, %s91
    %p102 = scmp.eq.s32.totalorder %s14, 0
    %p103 = por %p101, %p102
    %p104 = scmp.ne.s32.totalorder %s90, %s91
    %p105 = scmp.eq.s32.totalorder %s15, 1
    %p106 = por %p104, %p105
    %p108 = scmp.ne.s32.totalorder %s91, %s107
    %p109 = scmp.eq.s32.totalorder %s15, 0
    %p110 = por %p108, %p109
    %p111 = scmp.le.s32.totalorder 1, %s9
    %p112 = scmp.lt.s32.totalorder %s9, 3
    %p113 = pnand %p111, %p112
    %p114 = pneg %p113
    // Predicated region
    $region9: #{tpu_custom_call.1} parent=5 // pred_check
      _
    $region10: #{tpu_custom_call.1} parent=5 // pred_check_branch
      %116 = sbr.rel (%p113) target = $region12
    $region11: #{tpu_custom_call.1} parent=5 // pred_region
      %s117 = ssub.s32 %s9, 1
      // Predicated region
      $region13: #{tpu_custom_call.1} parent=11 // pred_check
        %p118 = pneg %p56
      $region14: #{tpu_custom_call.1} parent=11 // pred_check_branch
        %120 = sbr.rel (%p118) target = $region16
      $region15: #{tpu_custom_call.1} parent=11 // pred_region
        _
      $region16: #{tpu_custom_call.1} parent=11 // pred_fallthru
        _
      // Predicated region
      $region17: #{tpu_custom_call.1} parent=11 // pred_check
        %p121 = pneg %p77
      $region18: #{tpu_custom_call.1} parent=11 // pred_check_branch
        %123 = sbr.rel (%p121) target = $region20
      $region19: #{tpu_custom_call.1} parent=11 // pred_region
        _
      $region20: #{tpu_custom_call.1} parent=11 // pred_fallthru
        _
    $region12: #{tpu_custom_call.1} parent=5 // pred_fallthru
      _
    %p124 = scmp.lt.s32.totalorder %s9, 2
    // Predicated region
    $region21: #{tpu_custom_call.1} parent=5 // pred_check
      %p125 = pneg %p124
    $region22: #{tpu_custom_call.1} parent=5 // pred_check_branch
      %127 = sbr.rel (%p125) target = $region24
    $region23: #{tpu_custom_call.1} parent=5 // pred_region
      // Predicated region
      $region25: #{tpu_custom_call.1} parent=23 // pred_check
        %p128 = pneg %p29
      $region26: #{tpu_custom_call.1} parent=23 // pred_check_branch
        %130 = sbr.rel (%p128) target = $region28
      $region27: #{tpu_custom_call.1} parent=23 // pred_region
        %s131 = smul.u32 21, %s9
        %p132 = scmp.lt.s32.totalorder %s131, 41
        %s133 = scalar_select %p132, %s131, 41
        %s134 = smul.addr %s133, 8
        %s135 = scalar_lea.vmem %s0, %s134
        %s136 = smul.u32 21, %s9
      $region28: #{tpu_custom_call.1} parent=23 // pred_fallthru
        _
    $region24: #{tpu_custom_call.1} parent=5 // pred_fallthru
      _
    %p137 = scmp.le.s32.totalorder 1, %s9
    %p138 = scmp.lt.s32.totalorder %s9, 3
    %p139 = pnand %p137, %p138
    %p140 = pneg %p139
    // Predicated region
    $region29: #{tpu_custom_call.1} parent=5 // pred_check
      _
    $region30: #{tpu_custom_call.1} parent=5 // pred_check_branch
      %142 = sbr.rel (%p139) target = $region32
    $region31: #{tpu_custom_call.1} parent=5 // pred_region
      %s143 = ssub.s32 %s9, 1
      %s144 = smul.u32 21, %s14
      %p145 = scmp.lt.s32.totalorder %s144, 41
      %s146 = scalar_select %p145, %s144, 41
      %s147 = smul.addr %s146, 8
      %s148 = scalar_lea.vmem %s0, %s147
      %p149 = pneg %p35
      %p150 = pneg %p32
      %p151 = pneg %p56
      %p152 = pneg %p53
      %p153 = pneg %p77
      %p154 = pneg %p74
      %p155 = pneg %p103
      %p156 = pneg %p100
      %s157 = smul.u32 21, %s14
      %p158 = scmp.lt.s32.totalorder %s157, 41
      %s159 = scalar_select %p158, %s157, 41
      %s160 = smul.addr %s159, 8
      %s161 = scalar_lea.vmem %s3, %s160
      %s162 = smul.u32 21, %s14
      %p163 = scmp.lt.s32.totalorder %s162, 41
      %s164 = scalar_select %p163, %s162, 41
      %s165 = smul.addr %s164, 8
      %s166 = scalar_lea.vmem %s0, %s165
      %s167 = smul.u32 21, %s14
      %s168 = smul.u32 21, %s14
      %p169 = scmp.lt.s32.totalorder %s168, 41
      %s170 = scalar_select %p169, %s168, 41
      %s171 = smul.addr %s170, 8
      %s172 = scalar_lea.vmem %s3, %s171
      %s173 = smul.u32 21, %s14
      %v174 = vld [vmem:[%s166] sm:$0xff]
      %v175 = vld [vmem:[%s166 + $0x8] sm:$0xff]
      %v176 = vld [vmem:[%s166 + $0x10] sm:$0xff]
      %v177 = vld [vmem:[%s166 + $0x18] sm:$0xff]
      %v178 = vld [vmem:[%s166 + $0x20] sm:$0xff]
      %v179 = vld [vmem:[%s166 + $0x28] sm:$0xff]
      %v180 = vld [vmem:[%s166 + $0x30] sm:$0xff]
      %v181 = vld [vmem:[%s166 + $0x38] sm:$0xff]
      %v182 = vld [vmem:[%s166 + $0x40] sm:$0xff]
      %v183 = vld [vmem:[%s166 + $0x48] sm:$0xff]
      %v184 = vld [vmem:[%s166 + $0x50] sm:$0xff]
      %v185 = vld [vmem:[%s166 + $0x58] sm:$0xff]
      %v186 = vld [vmem:[%s166 + $0x60] sm:$0xff]
      %v187 = vld [vmem:[%s166 + $0x68] sm:$0xff]
      %v188 = vld [vmem:[%s166 + $0x70] sm:$0xff]
      %v189 = vld [vmem:[%s166 + $0x78] sm:$0xff]
      %v190 = vld [vmem:[%s166 + $0x80] sm:$0xff]
      %v191 = vld [vmem:[%s166 + $0x88] sm:$0xff]
      %v192 = vld [vmem:[%s166 + $0x90] sm:$0xff]
      %v193 = vld [vmem:[%s166 + $0x98] sm:$0xff]
      %v194 = vld [vmem:[%s166 + $0xa0] sm:$0xff]
      %v195 = vld [vmem:[%s1] sm:$0xff]
      %v196 = vld [vmem:[%s1 + $0x8] sm:$0x3]
      %v197 = vld [vmem:[%s2] sm:$0x1]
      %v199 = vlaneseq
      %v200 = vshrl.u32 %v199, 7
      %v201 = vsub.s32 0, %v200
      %v202 = vrot.slane %v197, %v201
      %vm204 = vcmask 80896
      %v206 = vsel %vm204, %v174, 0
      %v209 = vsel %vm204, %v175, 0
      %v212 = vsel %vm204, %v176, 0
      %v215 = vsel %vm204, %v177, 0
      %v218 = vsel %vm204, %v178, 0
      %v221 = vsel %vm204, %v179, 0
      %v224 = vsel %vm204, %v180, 0
      %v227 = vsel %vm204, %v181, 0
      %v230 = vsel %vm204, %v182, 0
      %v233 = vsel %vm204, %v183, 0
      %v236 = vsel %vm204, %v184, 0
      %v239 = vsel %vm204, %v185, 0
      %v242 = vsel %vm204, %v186, 0
      %v245 = vsel %vm204, %v187, 0
      %v248 = vsel %vm204, %v188, 0
      %v251 = vsel %vm204, %v189, 0
      %v254 = vsel %vm204, %v190, 0
      %v257 = vsel %vm204, %v191, 0
      %v260 = vsel %vm204, %v192, 0
      %v263 = vsel %vm204, %v193, 0
      %v266 = vsel %vm204, %v194, 0
      %vm268 = vcmask 1041408
      %v270 = vsel %vm268, %v196, 0
      %272 = vmatprep.subr.mxu0 0.0
      %273 = vmatpush1.msra.mxu0 %v195
      %274 = vmatprep.subr.mxu0 0.0
      %275 = vmatpush1.msra.mxu0 %v270
      %276 = vmatprep.subr.mxu0 0.0
      %277 = vmatpush1.msra.mxu0 0.0
      %278 = vmatprep.subr.mxu0 0.0
      %279 = vmatpush1.msra.mxu0 0.0
      %280 = vmatprep.subr.mxu0 0.0
      %281 = vmatpush1.msra.mxu0 0.0
      %282 = vmatprep.subr.mxu0 0.0
      %283 = vmatpush1.msra.mxu0 0.0
      %284 = vmatprep.subr.mxu0 0.0
      %285 = vmatpush1.msra.mxu0 0.0
      %286 = vmatprep.subr.mxu0 0.0
      %287 = vmatpush1.msra.mxu0 0.0
      %288 = vmatprep.subr.mxu0 0.0
      %289 = vmatpush1.msra.mxu0 0.0
      %290 = vmatprep.subr.mxu0 0.0
      %291 = vmatpush1.msra.mxu0 0.0
      %292 = vmatprep.subr.mxu0 0.0
      %293 = vmatpush1.msra.mxu0 0.0
      %294 = vmatprep.subr.mxu0 0.0
      %295 = vmatpush1.msra.mxu0 0.0
      %296 = vmatprep.subr.mxu0 0.0
      %297 = vmatpush1.msra.mxu0 0.0
      %298 = vmatprep.subr.mxu0 0.0
      %299 = vmatpush1.msra.mxu0 0.0
      %300 = vmatprep.subr.mxu0 0.0
      %301 = vmatpush1.msra.mxu0 0.0
      %302 = vmatprep.subr.mxu0 0.0
      %303 = vmatpush1.msra.mxu0 0.0
      %304 = vmatprep.subr.mxu0 0.0
      %305 = vmatpush1.msra.mxu0 0.0
      %306 = vmatprep.subr.mxu0 0.0
      %307 = vmatpush1.msra.mxu0 0.0
      %308 = vmatprep.subr.mxu0 0.0
      %309 = vmatpush1.msra.mxu0 0.0
      %310 = vmatprep.subr.mxu0 0.0
      %311 = vmatpush1.msra.mxu0 0.0
      %312 = vmatprep.subr.mxu0 0.0
      %313 = vmatpush1.msra.mxu0 0.0
      %314 = vmatprep.subr.mxu0 0.0
      %315 = vmatpush1.msra.mxu0 0.0
      %316 = vmatprep.subr.mxu0 0.0
      %317 = vmatpush1.msra.mxu0 0.0
      %318 = vmatprep.subr.mxu0 0.0
      %319 = vmatpush1.msra.mxu0 0.0
      %320 = vmatprep.subr.mxu0 0.0
      %321 = vmatpush1.msra.mxu0 0.0
      %322 = vmatprep.subr.mxu0 0.0
      %323 = vmatpush1.msra.mxu0 0.0
      %324 = vmatprep.subr.mxu0 0.0
      %325 = vmatpush1.msra.mxu0 0.0
      %326 = vmatprep.subr.mxu0 0.0
      %327 = vmatpush1.msra.mxu0 0.0
      %328 = vmatprep.subr.mxu0 0.0
      %329 = vmatpush1.msra.mxu0 0.0
      %330 = vmatprep.subr.mxu0 0.0
      %331 = vmatpush1.msra.mxu0 0.0
      %332 = vmatprep.subr.mxu0 0.0
      %333 = vmatpush1.msra.mxu0 0.0
      %334 = vmatprep.subr.mxu0 0.0
      %335 = vmatpush1.msra.mxu0 0.0
      %336 = vmatprep.mubr.f32.mxu0 0.0
      %337 = vmatmul.mubr.f32.gmra.mrb[0].mxu0 %v206
      %v338 = vpop.f32.mrb[0].mxu0
      %v339 = vadd.f32 %v202, %v338
      %v340 = vpop.f32.mrb[0].mxu0
      %341 = vmatprep.mubr.f32.mxu0 0.0
      %342 = vmatmul.mubr.f32.gmra.mrb[0].mxu0 %v209
      %v343 = vpop.f32.mrb[0].mxu0
      %v344 = vadd.f32 %v202, %v343
      %v345 = vpop.f32.mrb[0].mxu0
      %346 = vmatprep.mubr.f32.mxu0 0.0
      %347 = vmatmul.mubr.f32.gmra.mrb[0].mxu0 %v212
      %v348 = vpop.f32.mrb[0].mxu0
      %v349 = vadd.f32 %v202, %v348
      %v350 = vpop.f32.mrb[0].mxu0
      %351 = vmatprep.mubr.f32.mxu0 0.0
      %352 = vmatmul.mubr.f32.gmra.mrb[0].mxu0 %v215
      %v353 = vpop.f32.mrb[0].mxu0
      %v354 = vadd.f32 %v202, %v353
      %v355 = vpop.f32.mrb[0].mxu0
      %356 = vmatprep.mubr.f32.mxu0 0.0
      %357 = vmatmul.mubr.f32.gmra.mrb[0].mxu0 %v218
      %v358 = vpop.f32.mrb[0].mxu0
      %v359 = vadd.f32 %v202, %v358
      %v360 = vpop.f32.mrb[0].mxu0
      %361 = vmatprep.mubr.f32.mxu0 0.0
      %362 = vmatmul.mubr.f32.gmra.mrb[0].mxu0 %v221
      %v363 = vpop.f32.mrb[0].mxu0
      %v364 = vadd.f32 %v202, %v363
      %v365 = vpop.f32.mrb[0].mxu0
      %366 = vmatprep.mubr.f32.mxu0 0.0
      %367 = vmatmul.mubr.f32.gmra.mrb[0].mxu0 %v224
      %v368 = vpop.f32.mrb[0].mxu0
      %v369 = vadd.f32 %v202, %v368
      %v370 = vpop.f32.mrb[0].mxu0
      %371 = vmatprep.mubr.f32.mxu0 0.0
      %372 = vmatmul.mubr.f32.gmra.mrb[0].mxu0 %v227
      %v373 = vpop.f32.mrb[0].mxu0
      %v374 = vadd.f32 %v202, %v373
      %v375 = vpop.f32.mrb[0].mxu0
      %376 = vmatprep.mubr.f32.mxu0 0.0
      %377 = vmatmul.mubr.f32.gmra.mrb[0].mxu0 %v230
      %v378 = vpop.f32.mrb[0].mxu0
      %v379 = vadd.f32 %v202, %v378
      %v380 = vpop.f32.mrb[0].mxu0
      %381 = vmatprep.mubr.f32.mxu0 0.0
      %382 = vmatmul.mubr.f32.gmra.mrb[0].mxu0 %v233
      %v383 = vpop.f32.mrb[0].mxu0
      %v384 = vadd.f32 %v202, %v383
      %v385 = vpop.f32.mrb[0].mxu0
      %386 = vmatprep.mubr.f32.mxu0 0.0
      %387 = vmatmul.mubr.f32.gmra.mrb[0].mxu0 %v236
      %v388 = vpop.f32.mrb[0].mxu0
      %v389 = vadd.f32 %v202, %v388
      %v390 = vpop.f32.mrb[0].mxu0
      %391 = vmatprep.mubr.f32.mxu0 0.0
      %392 = vmatmul.mubr.f32.gmra.mrb[0].mxu0 %v239
      %v393 = vpop.f32.mrb[0].mxu0
      %v394 = vadd.f32 %v202, %v393
      %v395 = vpop.f32.mrb[0].mxu0
      %396 = vmatprep.mubr.f32.mxu0 0.0
      %397 = vmatmul.mubr.f32.gmra.mrb[0].mxu0 %v242
      %v398 = vpop.f32.mrb[0].mxu0
      %v399 = vadd.f32 %v202, %v398
      %v400 = vpop.f32.mrb[0].mxu0
      %401 = vmatprep.mubr.f32.mxu0 0.0
      %402 = vmatmul.mubr.f32.gmra.mrb[0].mxu0 %v245
      %v403 = vpop.f32.mrb[0].mxu0
      %v404 = vadd.f32 %v202, %v403
      %v405 = vpop.f32.mrb[0].mxu0
      %406 = vmatprep.mubr.f32.mxu0 0.0
      %407 = vmatmul.mubr.f32.gmra.mrb[0].mxu0 %v248
      %v408 = vpop.f32.mrb[0].mxu0
      %v409 = vadd.f32 %v202, %v408
      %v410 = vpop.f32.mrb[0].mxu0
      %411 = vmatprep.mubr.f32.mxu0 0.0
      %412 = vmatmul.mubr.f32.gmra.mrb[0].mxu0 %v251
      %v413 = vpop.f32.mrb[0].mxu0
      %v414 = vadd.f32 %v202, %v413
      %v415 = vpop.f32.mrb[0].mxu0
      %416 = vmatprep.mubr.f32.mxu0 0.0
      %417 = vmatmul.mubr.f32.gmra.mrb[0].mxu0 %v254
      %v418 = vpop.f32.mrb[0].mxu0
      %v419 = vadd.f32 %v202, %v418
      %v420 = vpop.f32.mrb[0].mxu0
      %421 = vmatprep.mubr.f32.mxu0 0.0
      %422 = vmatmul.mubr.f32.gmra.mrb[0].mxu0 %v257
      %v423 = vpop.f32.mrb[0].mxu0
      %v424 = vadd.f32 %v202, %v423
      %v425 = vpop.f32.mrb[0].mxu0
      %426 = vmatprep.mubr.f32.mxu0 0.0
      %427 = vmatmul.mubr.f32.gmra.mrb[0].mxu0 %v260
      %v428 = vpop.f32.mrb[0].mxu0
      %v429 = vadd.f32 %v202, %v428
      %v430 = vpop.f32.mrb[0].mxu0
      %431 = vmatprep.mubr.f32.mxu0 0.0
      %432 = vmatmul.mubr.f32.gmra.mrb[0].mxu0 %v263
      %v433 = vpop.f32.mrb[0].mxu0
      %v434 = vadd.f32 %v202, %v433
      %v435 = vpop.f32.mrb[0].mxu0
      %436 = vmatprep.mubr.f32.mxu0 0.0
      %437 = vmatmul.mubr.f32.gmra.mrb[0].mxu0 %v266
      %v438 = vpop.f32.mrb[0].mxu0
      %v439 = vadd.f32 %v202, %v438
      %v440 = vpop.f32.mrb[0].mxu0
      %441 = vdwg.mxu0
      %vm442 = vcmask 31744
      %443 = vst.msk [vmem:[%s172] sm:$0xff] %vm442, %v339
      %444 = vst.msk [vmem:[%s172 + $0x8] sm:$0xff] %vm442, %v344
      %445 = vst.msk [vmem:[%s172 + $0x10] sm:$0xff] %vm442, %v349
      %446 = vst.msk [vmem:[%s172 + $0x18] sm:$0xff] %vm442, %v354
      %447 = vst.msk [vmem:[%s172 + $0x20] sm:$0xff] %vm442, %v359
      %448 = vst.msk [vmem:[%s172 + $0x28] sm:$0xff] %vm442, %v364
      %449 = vst.msk [vmem:[%s172 + $0x30] sm:$0xff] %vm442, %v369
      %450 = vst.msk [vmem:[%s172 + $0x38] sm:$0xff] %vm442, %v374
      %451 = vst.msk [vmem:[%s172 + $0x40] sm:$0xff] %vm442, %v379
      %452 = vst.msk [vmem:[%s172 + $0x48] sm:$0xff] %vm442, %v384
      %453 = vst.msk [vmem:[%s172 + $0x50] sm:$0xff] %vm442, %v389
      %454 = vst.msk [vmem:[%s172 + $0x58] sm:$0xff] %vm442, %v394
      %455 = vst.msk [vmem:[%s172 + $0x60] sm:$0xff] %vm442, %v399
      %456 = vst.msk [vmem:[%s172 + $0x68] sm:$0xff] %vm442, %v404
      %457 = vst.msk [vmem:[%s172 + $0x70] sm:$0xff] %vm442, %v409
      %458 = vst.msk [vmem:[%s172 + $0x78] sm:$0xff] %vm442, %v414
      %459 = vst.msk [vmem:[%s172 + $0x80] sm:$0xff] %vm442, %v419
      %460 = vst.msk [vmem:[%s172 + $0x88] sm:$0xff] %vm442, %v424
      %461 = vst.msk [vmem:[%s172 + $0x90] sm:$0xff] %vm442, %v429
      %462 = vst.msk [vmem:[%s172 + $0x98] sm:$0xff] %vm442, %v434
      %463 = vst.msk [vmem:[%s172 + $0xa0] sm:$0xff] %vm442, %v439
      %s464 = smul.u32 21, %s14
      %p465 = scmp.lt.s32.totalorder %s464, 41
      %s466 = scalar_select %p465, %s464, 41
      %s467 = smul.addr %s466, 8
      %s468 = scalar_lea.vmem %s3, %s467
      // Predicated region
      $region33: #{tpu_custom_call.1} parent=31 // pred_check
        %p469 = pneg %p100
      $region34: #{tpu_custom_call.1} parent=31 // pred_check_branch
        %471 = sbr.rel (%p469) target = $region36
      $region35: #{tpu_custom_call.1} parent=31 // pred_region
        %s472 = smul.u32 21, %s14
      $region36: #{tpu_custom_call.1} parent=31 // pred_fallthru
        _
    $region32: #{tpu_custom_call.1} parent=5 // pred_fallthru
      _
    %p473 = scmp.le.s32.totalorder 2, %s9
    // Predicated region
    $region37: #{tpu_custom_call.1} parent=5 // pred_check
      %p474 = pneg %p473
    $region38: #{tpu_custom_call.1} parent=5 // pred_check_branch
      %476 = sbr.rel (%p474) target = $region40
    $region39: #{tpu_custom_call.1} parent=5 // pred_region
      %s477 = ssub.s32 %s9, 2
      // Predicated region
      $region41: #{tpu_custom_call.1} parent=39 // pred_check
        %p478 = pneg %p106
      $region42: #{tpu_custom_call.1} parent=39 // pred_check_branch
        %480 = sbr.rel (%p478) target = $region44
      $region43: #{tpu_custom_call.1} parent=39 // pred_region
        %s481 = smul.u32 21, %s15
        %p482 = scmp.lt.s32.totalorder %s481, 41
        %s483 = scalar_select %p482, %s481, 41
        %s484 = smul.addr %s483, 8
        %s485 = scalar_lea.vmem %s3, %s484
      $region44: #{tpu_custom_call.1} parent=39 // pred_fallthru
        _
    $region40: #{tpu_custom_call.1} parent=5 // pred_fallthru
      _
  $region6: #{tpu_custom_call.1} parent=0 // loop_footer
    %s13 = sadd.s32 1, %s9
  $region7: #{tpu_custom_call.1} parent=0 // loop_footer_branch
    %8 = sbr.rel target = $region3
  $region8: #{tpu_custom_call.1} parent=0 // loop_exit
    _

</llo_original>
